<compile_context>
chip_gen: v7x
topology: tpu7x:2x2x1
jax: 0.10.0
libtpu: 0.0.40
codegen_flags: <defaults>
</compile_context>

<pallas_src>
import jax
import jax.numpy as jnp
from jax.experimental import pallas as pl
from jax.experimental.pallas import tpu as pltpu

LOGIT_SCALE = 100.0   # CLIP logit_scale.exp()
EPS = 1e-6


def _proposal_clip_kernel(img_ref, mask_ref, coef_a_ref, coef_b_ref,
                          wproj_ref, text_t_ref, out_ref,
                          s_img_ref, s_mask_ref):
    """Grid = (B tiles [parallel], HW tiles [arbitrary reduction, last])."""
    h = pl.program_id(1)

    @pl.when(h == 0)
    def _init():
        s_img_ref[...] = jnp.zeros_like(s_img_ref)
        s_mask_ref[...] = jnp.zeros_like(s_mask_ref)

    img = img_ref[...]                                    # (Bt, C, HWt) f32
    msk = mask_ref[...]                                   # (Bt, HWt)    f32

    # The only full-rate work: masked spatial sums (mul + lane reduction).
    s_img_ref[...] += jnp.sum(img * msk[:, None, :], axis=-1)        # (Bt, C)
    s_mask_ref[...] += jnp.sum(msk, axis=-1, keepdims=True)          # (Bt, 1)

    @pl.when(h == pl.num_programs(1) - 1)
    def _finalize():
        # pooled = (sum(img*mask) - mean*sum(mask)) * inv_std / HW
        # coef_a = inv_std/HW, coef_b = mean*inv_std/HW   (both (1, C))
        pooled = (s_img_ref[...] * coef_a_ref[...]
                  - s_mask_ref[...] * coef_b_ref[...])                # (Bt, C)
        feat = jnp.dot(pooled, wproj_ref[...],
                       preferred_element_type=jnp.float32)            # (Bt, D)
        inv_n = jax.lax.rsqrt(
            jnp.sum(feat * feat, axis=-1, keepdims=True) + EPS)
        feat = feat * inv_n
        # text_t is pre-L2-normalized, pre-scaled by logit_scale, transposed.
        out_ref[...] = jnp.dot(feat, text_t_ref[...],
                               preferred_element_type=jnp.float32)    # (Bt, K)


def proposal_clip_classifier(images_nchw, masks, pixel_mean, pixel_std,
                             w_proj, text_features, *, hw_tile=None):
    """images_nchw: (B, C, H, W); masks: (B, H, W). Returns logits (B, K)."""
    B, C, H, W = images_nchw.shape
    HW = H * W
    K, D = text_features.shape

    # Free reshapes (contiguous NCHW -> (B, C, HW)); no broadcast tensors.
    img = images_nchw.reshape(B, C, HW).astype(jnp.float32)
    msk = masks.reshape(B, HW).astype(jnp.float32)

    # Fold mean/std/HW into two tiny coefficient rows (no divide in-kernel).
    inv_std = 1.0 / pixel_std.astype(jnp.float32)
    coef_a = (inv_std / HW).reshape(1, C)
    coef_b = (pixel_mean.astype(jnp.float32) * inv_std / HW).reshape(1, C)

    # Hoist the image-independent text normalization + logit scale.
    txt = text_features.astype(jnp.float32)
    txt = txt * jax.lax.rsqrt(jnp.sum(txt * txt, axis=-1, keepdims=True) + EPS)
    text_t = (LOGIT_SCALE * txt).T                                    # (D, K)

    w = w_proj.astype(jnp.float32)

    # Tile sizes: proposals on a parallel axis, HW on the reduction axis.
    bt = 8 if (B % 8 == 0) else B
    if hw_tile is not None and HW % hw_tile == 0:
        hwt = hw_tile
    else:
        hwt = HW
        for cand in (8192, 4096, 2048, 1024, 512, 256, 128):
            if HW % cand == 0:
                hwt = cand
                break
    grid = (B // bt, HW // hwt)

    logits = pl.pallas_call(
        _proposal_clip_kernel,
        out_shape=jax.ShapeDtypeStruct((B, K), jnp.float32),
        grid=grid,
        in_specs=[
            pl.BlockSpec((bt, C, hwt), lambda b, h: (b, 0, h)),   # images
            pl.BlockSpec((bt, hwt),    lambda b, h: (b, h)),      # masks
            pl.BlockSpec((1, C),       lambda b, h: (0, 0)),      # inv_std/HW
            pl.BlockSpec((1, C),       lambda b, h: (0, 0)),      # mean*inv_std/HW
            pl.BlockSpec((C, D),       lambda b, h: (0, 0)),      # projection
            pl.BlockSpec((D, K),       lambda b, h: (0, 0)),      # scaled text^T
        ],
        out_specs=pl.BlockSpec((bt, K), lambda b, h: (b, 0)),
        scratch_shapes=[pltpu.VMEM((bt, C), jnp.float32),   # sum(img*mask)
                        pltpu.VMEM((bt, 1), jnp.float32)],  # sum(mask)
        compiler_params=pltpu.CompilerParams(
            dimension_semantics=("parallel", "arbitrary")),
    )(img, msk, coef_a, coef_b, w, text_t)
    return logits


if __name__ == "__main__":
    key = jax.random.PRNGKey(0)
    B, C, H, W = 2, 3, 16, 16     # small NCHW proposal crops
    D, K = 32, 8                  # embed dim, number of class names

    k1, k2, k3, k4 = jax.random.split(key, 4)
    images = jax.random.uniform(k1, (B, C, H, W), jnp.float32, 0.0, 255.0)
    masks = (jax.random.uniform(k2, (B, H, W)) > 0.5).astype(jnp.float32)

    # CLIP pixel statistics (registered buffers in the PyTorch module)
    pixel_mean = jnp.array([122.7709383, 116.7460125, 104.09373615], jnp.float32)
    pixel_std = jnp.array([68.5005327, 66.6321579, 70.32316305], jnp.float32)

    # Deterministic synthetic "clip_adapter" parameters
    w_proj = jax.random.normal(k3, (C, D), jnp.float32) * 0.1
    text_features = jax.random.normal(k4, (K, D), jnp.float32)

    # hw_tile=128 so the toy spatial size (HW=256) exercises the pipelined
    # HW-reduction / pl.when accumulate path (2 reduction steps).
    logits = proposal_clip_classifier(images, masks, pixel_mean, pixel_std,
                                      w_proj, text_features, hw_tile=128)
    jax.block_until_ready(logits)

    # Pure-JAX reference with the *unfused* math of the module's hot path.
    m4 = masks[:, None, :, :]
    mean4 = pixel_mean.reshape(1, C, 1, 1)
    std4 = pixel_std.reshape(1, C, 1, 1)
    blended = images * m4 + (1.0 - m4) * mean4
    x = (blended - mean4) / std4
    pooled = jnp.mean(x, axis=(2, 3))
    feat = jnp.dot(pooled, w_proj, precision="highest")
    feat = feat * jax.lax.rsqrt(jnp.sum(feat * feat, -1, keepdims=True) + EPS)
    txt = text_features * jax.lax.rsqrt(
        jnp.sum(text_features * text_features, -1, keepdims=True) + EPS)
    ref = LOGIT_SCALE * jnp.dot(feat, txt.T, precision="highest")
    assert logits.shape == (B, K)
    assert bool(jnp.allclose(logits, ref, rtol=1e-3, atol=5e-2)), (
        "max abs diff = %g" % float(jnp.max(jnp.abs(logits - ref))))

    # eval-mode output of the PyTorch module: list of {'classification': (1, K)}
    sim = [{"classification": logits[i][None]} for i in range(B)]
    assert sim[0]["classification"].shape == (1, K)
    print("KERNEL_OK")
</pallas_src>

<mosaic_0001>
module attributes {stable_mosaic.version = 11 : i64} {
  func.func @_proposal_clip_kernel(%arg0: i32, %arg1: i32, %arg2: memref<2x3x128xf32, #tpu.memory_space<vmem>>, %arg3: memref<2x128xf32, #tpu.memory_space<vmem>>, %arg4: memref<1x3xf32, #tpu.memory_space<vmem>>, %arg5: memref<1x3xf32, #tpu.memory_space<vmem>>, %arg6: memref<3x32xf32, #tpu.memory_space<vmem>>, %arg7: memref<32x8xf32, #tpu.memory_space<vmem>>, %arg8: memref<2x8xf32, #tpu.memory_space<vmem>>, %arg9: memref<2x3xf32, #tpu.memory_space<vmem>>, %arg10: memref<2x1xf32, #tpu.memory_space<vmem>>) attributes {dimension_semantics = [#tpu.dimension_semantics<parallel>, #tpu.dimension_semantics<arbitrary>], iteration_bounds = array<i64: 1, 2>, scalar_prefetch = 0 : i64, scratch_operands = 2 : i64, tpu.core_type = #tpu.core_type<tc>, window_params = [{transform_indices = @transform_0, window_bounds = array<i64: 2, 3, 128>}, {transform_indices = @transform_1, window_bounds = array<i64: 2, 128>}, {pipeline_mode = #tpu.pipeline_mode<synchronous>, transform_indices = @transform_2, window_bounds = array<i64: 1, 3>}, {pipeline_mode = #tpu.pipeline_mode<synchronous>, transform_indices = @transform_3, window_bounds = array<i64: 1, 3>}, {pipeline_mode = #tpu.pipeline_mode<synchronous>, transform_indices = @transform_4, window_bounds = array<i64: 3, 32>}, {pipeline_mode = #tpu.pipeline_mode<synchronous>, transform_indices = @transform_5, window_bounds = array<i64: 32, 8>}, {transform_indices = @transform_6, window_bounds = array<i64: 2, 8>}]} {
    %c0_i32 = arith.constant 0 : i32
    %0 = arith.cmpi eq, %arg1, %c0_i32 : i32
    %1 = arith.extui %0 : i1 to i32
    %c0_i32_0 = arith.constant 0 : i32
    %2 = arith.cmpi ne, %1, %c0_i32_0 : i32
    scf.if %2 {
      %cst_15 = arith.constant 0.000000e+00 : f32
      %20 = vector.broadcast %cst_15 : f32 to vector<2x3xf32>
      %c0_16 = arith.constant 0 : index
      %c0_17 = arith.constant 0 : index
      %21 = vector.load %arg9[%c0_16, %c0_17] : memref<2x3xf32, #tpu.memory_space<vmem>>, vector<2x3xf32>
      tpu.vector_store %arg9[%c0_16, %c0_17], %20 {strides = array<i32>} : memref<2x3xf32, #tpu.memory_space<vmem>>, vector<2x3xf32>,
      %cst_18 = arith.constant 0.000000e+00 : f32
      %22 = vector.broadcast %cst_18 : f32 to vector<2x1xf32>
      %c0_19 = arith.constant 0 : index
      %c0_20 = arith.constant 0 : index
      %23 = vector.load %arg10[%c0_19, %c0_20] : memref<2x1xf32, #tpu.memory_space<vmem>>, vector<2x1xf32>
      tpu.vector_store %arg10[%c0_19, %c0_20], %22 {strides = array<i32>} : memref<2x1xf32, #tpu.memory_space<vmem>>, vector<2x1xf32>,
    } else {
    }
    %c0 = arith.constant 0 : index
    %c0_1 = arith.constant 0 : index
    %c0_2 = arith.constant 0 : index
    %3 = vector.load %arg2[%c0, %c0_1, %c0_2] : memref<2x3x128xf32, #tpu.memory_space<vmem>>, vector<2x3x128xf32>
    %c0_3 = arith.constant 0 : index
    %c0_4 = arith.constant 0 : index
    %4 = vector.load %arg3[%c0_3, %c0_4] : memref<2x128xf32, #tpu.memory_space<vmem>>, vector<2x128xf32>
    %c0_5 = arith.constant 0 : index
    %c0_6 = arith.constant 0 : index
    %5 = vector.load %arg9[%c0_5, %c0_6] : memref<2x3xf32, #tpu.memory_space<vmem>>, vector<2x3xf32>
    %6 = vector.shape_cast %4 : vector<2x128xf32> to vector<2x1x128xf32>
    %7 = vector.broadcast %6 : vector<2x1x128xf32> to vector<2x3x128xf32>
    %8 = arith.mulf %3, %7 : vector<2x3x128xf32>
    %cst = arith.constant dense<0.000000e+00> : vector<2x3xf32>
    %9 = vector.multi_reduction <add>, %8, %cst [2] : vector<2x3x128xf32> to vector<2x3xf32>
    %10 = arith.addf %5, %9 : vector<2x3xf32>
    %c0_7 = arith.constant 0 : index
    %c0_8 = arith.constant 0 : index
    %11 = vector.load %arg9[%c0_7, %c0_8] : memref<2x3xf32, #tpu.memory_space<vmem>>, vector<2x3xf32>
    tpu.vector_store %arg9[%c0_7, %c0_8], %10 {strides = array<i32>} : memref<2x3xf32, #tpu.memory_space<vmem>>, vector<2x3xf32>,
    %c0_9 = arith.constant 0 : index
    %c0_10 = arith.constant 0 : index
    %12 = vector.load %arg10[%c0_9, %c0_10] : memref<2x1xf32, #tpu.memory_space<vmem>>, vector<2x1xf32>
    %cst_11 = arith.constant dense<0.000000e+00> : vector<2xf32>
    %13 = vector.multi_reduction <add>, %4, %cst_11 [1] : vector<2x128xf32> to vector<2xf32>
    %14 = vector.shape_cast %13 : vector<2xf32> to vector<2x1xf32>
    %15 = arith.addf %12, %14 : vector<2x1xf32>
    %c0_12 = arith.constant 0 : index
    %c0_13 = arith.constant 0 : index
    %16 = vector.load %arg10[%c0_12, %c0_13] : memref<2x1xf32, #tpu.memory_space<vmem>>, vector<2x1xf32>
    tpu.vector_store %arg10[%c0_12, %c0_13], %15 {strides = array<i32>} : memref<2x1xf32, #tpu.memory_space<vmem>>, vector<2x1xf32>,
    %c1_i32 = arith.constant 1 : i32
    %17 = arith.cmpi eq, %arg1, %c1_i32 : i32
    %18 = arith.extui %17 : i1 to i32
    %c0_i32_14 = arith.constant 0 : i32
    %19 = arith.cmpi ne, %18, %c0_i32_14 : i32
    scf.if %19 {
      %c0_15 = arith.constant 0 : index
      %c0_16 = arith.constant 0 : index
      %20 = vector.load %arg9[%c0_15, %c0_16] : memref<2x3xf32, #tpu.memory_space<vmem>>, vector<2x3xf32>
      %c0_17 = arith.constant 0 : index
      %c0_18 = arith.constant 0 : index
      %21 = vector.load %arg4[%c0_17, %c0_18] : memref<1x3xf32, #tpu.memory_space<vmem>>, vector<1x3xf32>
      %22 = vector.broadcast %21 : vector<1x3xf32> to vector<2x3xf32>
      %23 = arith.mulf %20, %22 : vector<2x3xf32>
      %c0_19 = arith.constant 0 : index
      %c0_20 = arith.constant 0 : index
      %24 = vector.load %arg10[%c0_19, %c0_20] : memref<2x1xf32, #tpu.memory_space<vmem>>, vector<2x1xf32>
      %c0_21 = arith.constant 0 : index
      %c0_22 = arith.constant 0 : index
      %25 = vector.load %arg5[%c0_21, %c0_22] : memref<1x3xf32, #tpu.memory_space<vmem>>, vector<1x3xf32>
      %26 = vector.broadcast %24 : vector<2x1xf32> to vector<2x3xf32>
      %27 = vector.broadcast %25 : vector<1x3xf32> to vector<2x3xf32>
      %28 = arith.mulf %26, %27 : vector<2x3xf32>
      %29 = arith.subf %23, %28 : vector<2x3xf32>
      %c0_23 = arith.constant 0 : index
      %c0_24 = arith.constant 0 : index
      %30 = vector.load %arg6[%c0_23, %c0_24] : memref<3x32xf32, #tpu.memory_space<vmem>>, vector<3x32xf32>
      %cst_25 = arith.constant dense<0.000000e+00> : vector<2x32xf32>
      %31 = tpu.matmul %29, %30, %cst_25 {dimension_numbers = #tpu.dot_dimension_numbers<[1], [0], [0], [1], [0, 0, 1, 1], [], []>} : vector<2x3xf32>, vector<3x32xf32>, vector<2x32xf32> -> vector<2x32xf32>
      %32 = arith.mulf %31, %31 : vector<2x32xf32>
      %cst_26 = arith.constant dense<0.000000e+00> : vector<2xf32>
      %33 = vector.multi_reduction <add>, %32, %cst_26 [1] : vector<2x32xf32> to vector<2xf32>
      %34 = vector.shape_cast %33 : vector<2xf32> to vector<2x1xf32>
      %cst_27 = arith.constant 9.99999997E-7 : f32
      %35 = vector.broadcast %cst_27 : f32 to vector<2x1xf32>
      %36 = arith.addf %34, %35 : vector<2x1xf32>
      %37 = math.rsqrt %36 : vector<2x1xf32>
      %38 = vector.broadcast %37 : vector<2x1xf32> to vector<2x32xf32>
      %39 = arith.mulf %31, %38 : vector<2x32xf32>
      %c0_28 = arith.constant 0 : index
      %c0_29 = arith.constant 0 : index
      %40 = vector.load %arg7[%c0_28, %c0_29] : memref<32x8xf32, #tpu.memory_space<vmem>>, vector<32x8xf32>
      %cst_30 = arith.constant dense<0.000000e+00> : vector<2x8xf32>
      %41 = tpu.matmul %39, %40, %cst_30 {dimension_numbers = #tpu.dot_dimension_numbers<[1], [0], [0], [1], [0, 0, 1, 1], [], []>} : vector<2x32xf32>, vector<32x8xf32>, vector<2x8xf32> -> vector<2x8xf32>
      %c0_31 = arith.constant 0 : index
      %c0_32 = arith.constant 0 : index
      %42 = vector.load %arg8[%c0_31, %c0_32] : memref<2x8xf32, #tpu.memory_space<vmem>>, vector<2x8xf32>
      tpu.vector_store %arg8[%c0_31, %c0_32], %41 {strides = array<i32>} : memref<2x8xf32, #tpu.memory_space<vmem>>, vector<2x8xf32>,
    } else {
    }
    return
  }
  func.func @transform_0(%arg0: i32, %arg1: i32) -> (i32, i32, i32) {
    %c0_i32 = arith.constant 0 : i32
    %c0_i32_0 = arith.constant 0 : i32
    return %arg0, %c0_i32, %arg1 : i32, i32, i32
  }
  func.func @transform_1(%arg0: i32, %arg1: i32) -> (i32, i32) {
    %c0_i32 = arith.constant 0 : i32
    return %arg0, %arg1 : i32, i32
  }
  func.func @transform_2(%arg0: i32, %arg1: i32) -> (i32, i32) {
    %c0_i32 = arith.constant 0 : i32
    %c0_i32_0 = arith.constant 0 : i32
    %c0_i32_1 = arith.constant 0 : i32
    return %c0_i32, %c0_i32_0 : i32, i32
  }
  func.func @transform_3(%arg0: i32, %arg1: i32) -> (i32, i32) {
    %c0_i32 = arith.constant 0 : i32
    %c0_i32_0 = arith.constant 0 : i32
    %c0_i32_1 = arith.constant 0 : i32
    return %c0_i32, %c0_i32_0 : i32, i32
  }
  func.func @transform_4(%arg0: i32, %arg1: i32) -> (i32, i32) {
    %c0_i32 = arith.constant 0 : i32
    %c0_i32_0 = arith.constant 0 : i32
    %c0_i32_1 = arith.constant 0 : i32
    return %c0_i32, %c0_i32_0 : i32, i32
  }
  func.func @transform_5(%arg0: i32, %arg1: i32) -> (i32, i32) {
    %c0_i32 = arith.constant 0 : i32
    %c0_i32_0 = arith.constant 0 : i32
    %c0_i32_1 = arith.constant 0 : i32
    return %c0_i32, %c0_i32_0 : i32, i32
  }
  func.func @transform_6(%arg0: i32, %arg1: i32) -> (i32, i32) {
    %c0_i32 = arith.constant 0 : i32
    %c0_i32_0 = arith.constant 0 : i32
    return %arg0, %c0_i32 : i32, i32
  }
}

</mosaic_0001>

<llo_original>
// kernel: tpu_custom_call.1
$region0: #{tpu_custom_call.1}
  #allocation0 [shape = 'u32[]', space=smem, size = 0x4, offset = 0x4, fixed_abs, tag = 'smem constant byte address 0x4 - core index']
  #allocation1 [shape = 'u32[144,128]{1,0:T(1,128)}', space=vmem, size = 0x12000, scoped, tag = 'internal scratch']
  #allocation2 [shape = 'f32[2,3]{1,0:T(2,128)}', space=vmem, size = 0x400, scoped, tag = 'scratch operand']
  #allocation3 [shape = 'f32[2,1]{1,0:T(2,128)}', space=vmem, size = 0x400, scoped, tag = 'scratch operand']
  %s0 = inlined_call_operand.vmem [shape: f32[2,3,256], index: 0, kind: input, shape index: {}]
  %s1 = inlined_call_operand.vmem [shape: f32[2,256], index: 1, kind: input, shape index: {}]
  %s2 = inlined_call_operand.vmem [shape: f32[1,3], index: 2, kind: input, shape index: {}]
  %s3 = inlined_call_operand.vmem [shape: f32[1,3], index: 3, kind: input, shape index: {}]
  %s4 = inlined_call_operand.vmem [shape: f32[3,32], index: 4, kind: input, shape index: {}]
  %s5 = inlined_call_operand.vmem [shape: f32[32,8], index: 5, kind: input, shape index: {}]
  %s6 = inlined_call_operand.hbm [shape: f32[2,8], index: 6, kind: output, shape index: {}]
  %s7 = sld [smem:[#allocation0]]
  $region106: #{tpu_custom_call.1} parent=0
    _
  %s9 = ssub.s32 1, %s7
  %s10 = scalar_select 0, %s9, %s7
  $region1: #{tpu_custom_call.1} parent=0
    #allocation4 [shape = 'u8[8192]{0}', space=vmem, size = 0x2000, scoped, tag = 'input window, operand 0']
    #allocation5 [shape = 'u8[1024]{0}', space=vmem, size = 0x400, scoped, tag = 'output window, operand 0, single buffered']
    #allocation6 [shape = 's32[2]{0}', space=sflag, size = 0x8, scoped, tag = 'scoped memory for tpu_custom_call.1']
    %11 = vsyncpa [#allocation6], 0
    loop: start=0, step=1, limit=4
    $region2: #{tpu_custom_call.1} parent=1 // loop_pre_header
      _
    $region3: #{tpu_custom_call.1} parent=1 // loop_header
      %s13 = sphi 0, %s17
      %p14 = scmp.ge.s32.totalorder %s13, 4
      %s20 = sphi 0, %s32
      %s21 = sphi 0, %s28
      %s22 = sphi 0, %s20
      %s23 = sphi 0, %s21
      %s24 = sphi 0, %s22
      %s25 = sphi 0, %s23
      %s37 = sphi 0, %s39
      %s40 = sphi 0, %s37
      %s41 = sphi 0, %s40
      %s57 = sphi 0, %s41
      %s65 = sphi 0, %s67
      %s68 = sphi 0, %s65
      %s69 = sphi 0, %s68
      %s85 = sphi 0, %s69
      %s89 = sphi 0, %s89
      %s91 = sphi 0, %s89
      %s92 = sphi 0, %s91
      %s106 = sphi 0, %s92
      %s110 = sphi 0, %s110
      %s112 = sphi 0, %s110
      %s113 = sphi 0, %s112
      %s127 = sphi 0, %s113
      %s131 = sphi 0, %s131
      %s133 = sphi 0, %s131
      %s134 = sphi 0, %s133
      %s148 = sphi 0, %s134
      %s152 = sphi 0, %s152
      %s154 = sphi 0, %s152
      %s155 = sphi 0, %s154
      %s169 = sphi 0, %s155
      %s175 = sphi 0, %s177
      %s178 = sphi 0, %s175
      %s179 = sphi 0, %s178
      %s195 = sphi 0, %s179
    $region4: #{tpu_custom_call.1} parent=1 // loop_header_branch
      %16 = sbr.rel (%p14) target = $region8
    $region5: #{tpu_custom_call.1} parent=1 // loop_body
      %s18 = ssub.s32 %s13, 1
      %s19 = ssub.s32 %s13, 2
      %s26 = sadd.s32 1, %s21
      %p27 = scmp.ge.s32.totalorder %s26, 2
      %s28 = scalar_select %p27, 0, %s26
      %s29 = sadd.s32 1, %s20
      %s30 = scalar_select %p27, %s29, %s20
      %p31 = scmp.ge.s32.totalorder %s30, 1
      %s32 = scalar_select %p31, 0, %s30
      %s33 = ssub.s32 %s20, %s32
      %s34 = ssub.s32 %s21, %s28
      %s35 = sor.u32 %s33, %s34
      %p36 = scmp.eq.s32.totalorder %s35, 0
      %s38 = sadd.s32 %s37, 1
      %s39 = scalar_select %p36, %s37, %s38
      %p42 = pneg %p36
      %p43 = scmp.eq.s32.totalorder %s13, 1
      %p44 = por %p42, %p43
      %p45 = scmp.ne.s32.totalorder %s37, %s40
      %p46 = scmp.eq.s32.totalorder %s13, 0
      %p47 = por %p45, %p46
      %p48 = scmp.ne.s32.totalorder %s37, %s40
      %p49 = scmp.eq.s32.totalorder %s18, 1
      %p50 = por %p48, %p49
      %p51 = scmp.ne.s32.totalorder %s40, %s41
      %p52 = scmp.eq.s32.totalorder %s18, 0
      %p53 = por %p51, %p52
      %p54 = scmp.ne.s32.totalorder %s40, %s41
      %p55 = scmp.eq.s32.totalorder %s19, 1
      %p56 = por %p54, %p55
      %p58 = scmp.ne.s32.totalorder %s41, %s57
      %p59 = scmp.eq.s32.totalorder %s19, 0
      %p60 = por %p58, %p59
      %s61 = ssub.s32 %s20, %s32
      %s62 = ssub.s32 %s21, %s28
      %s63 = sor.u32 %s61, %s62
      %p64 = scmp.eq.s32.totalorder %s63, 0
      %s66 = sadd.s32 %s65, 1
      %s67 = scalar_select %p64, %s65, %s66
      %p70 = pneg %p64
      %p71 = scmp.eq.s32.totalorder %s13, 1
      %p72 = por %p70, %p71
      %p73 = scmp.ne.s32.totalorder %s65, %s68
      %p74 = scmp.eq.s32.totalorder %s13, 0
      %p75 = por %p73, %p74
      %p76 = scmp.ne.s32.totalorder %s65, %s68
      %p77 = scmp.eq.s32.totalorder %s18, 1
      %p78 = por %p76, %p77
      %p79 = scmp.ne.s32.totalorder %s68, %s69
      %p80 = scmp.eq.s32.totalorder %s18, 0
      %p81 = por %p79, %p80
      %p82 = scmp.ne.s32.totalorder %s68, %s69
      %p83 = scmp.eq.s32.totalorder %s19, 1
      %p84 = por %p82, %p83
      %p86 = scmp.ne.s32.totalorder %s69, %s85
      %p87 = scmp.eq.s32.totalorder %s19, 0
      %p88 = por %p86, %p87
      %s90 = sadd.s32 %s89, 1
      %p93 = scmp.eq.s32.totalorder %s13, 1
      %p94 = scmp.ne.s32.totalorder %s89, %s91
      %p95 = scmp.eq.s32.totalorder %s13, 0
      %p96 = por %p94, %p95
      %p97 = scmp.ne.s32.totalorder %s89, %s91
      %p98 = scmp.eq.s32.totalorder %s18, 1
      %p99 = por %p97, %p98
      %p100 = scmp.ne.s32.totalorder %s91, %s92
      %p101 = scmp.eq.s32.totalorder %s18, 0
      %p102 = por %p100, %p101
      %p103 = scmp.ne.s32.totalorder %s91, %s92
      %p104 = scmp.eq.s32.totalorder %s19, 1
      %p105 = por %p103, %p104
      %p107 = scmp.ne.s32.totalorder %s92, %s106
      %p108 = scmp.eq.s32.totalorder %s19, 0
      %p109 = por %p107, %p108
      %s111 = sadd.s32 %s110, 1
      %p114 = scmp.eq.s32.totalorder %s13, 1
      %p115 = scmp.ne.s32.totalorder %s110, %s112
      %p116 = scmp.eq.s32.totalorder %s13, 0
      %p117 = por %p115, %p116
      %p118 = scmp.ne.s32.totalorder %s110, %s112
      %p119 = scmp.eq.s32.totalorder %s18, 1
      %p120 = por %p118, %p119
      %p121 = scmp.ne.s32.totalorder %s112, %s113
      %p122 = scmp.eq.s32.totalorder %s18, 0
      %p123 = por %p121, %p122
      %p124 = scmp.ne.s32.totalorder %s112, %s113
      %p125 = scmp.eq.s32.totalorder %s19, 1
      %p126 = por %p124, %p125
      %p128 = scmp.ne.s32.totalorder %s113, %s127
      %p129 = scmp.eq.s32.totalorder %s19, 0
      %p130 = por %p128, %p129
      %s132 = sadd.s32 %s131, 1
      %p135 = scmp.eq.s32.totalorder %s13, 1
      %p136 = scmp.ne.s32.totalorder %s131, %s133
      %p137 = scmp.eq.s32.totalorder %s13, 0
      %p138 = por %p136, %p137
      %p139 = scmp.ne.s32.totalorder %s131, %s133
      %p140 = scmp.eq.s32.totalorder %s18, 1
      %p141 = por %p139, %p140
      %p142 = scmp.ne.s32.totalorder %s133, %s134
      %p143 = scmp.eq.s32.totalorder %s18, 0
      %p144 = por %p142, %p143
      %p145 = scmp.ne.s32.totalorder %s133, %s134
      %p146 = scmp.eq.s32.totalorder %s19, 1
      %p147 = por %p145, %p146
      %p149 = scmp.ne.s32.totalorder %s134, %s148
      %p150 = scmp.eq.s32.totalorder %s19, 0
      %p151 = por %p149, %p150
      %s153 = sadd.s32 %s152, 1
      %p156 = scmp.eq.s32.totalorder %s13, 1
      %p157 = scmp.ne.s32.totalorder %s152, %s154
      %p158 = scmp.eq.s32.totalorder %s13, 0
      %p159 = por %p157, %p158
      %p160 = scmp.ne.s32.totalorder %s152, %s154
      %p161 = scmp.eq.s32.totalorder %s18, 1
      %p162 = por %p160, %p161
      %p163 = scmp.ne.s32.totalorder %s154, %s155
      %p164 = scmp.eq.s32.totalorder %s18, 0
      %p165 = por %p163, %p164
      %p166 = scmp.ne.s32.totalorder %s154, %s155
      %p167 = scmp.eq.s32.totalorder %s19, 1
      %p168 = por %p166, %p167
      %p170 = scmp.ne.s32.totalorder %s155, %s169
      %p171 = scmp.eq.s32.totalorder %s19, 0
      %p172 = por %p170, %p171
      %s173 = ssub.s32 %s20, %s32
      %p174 = scmp.eq.s32.totalorder %s173, 0
      %s176 = sadd.s32 %s175, 1
      %s177 = scalar_select %p174, %s175, %s176
      %p180 = pneg %p174
      %p181 = scmp.eq.s32.totalorder %s13, 1
      %p182 = por %p180, %p181
      %p183 = scmp.ne.s32.totalorder %s175, %s178
      %p184 = scmp.eq.s32.totalorder %s13, 0
      %p185 = por %p183, %p184
      %p186 = scmp.ne.s32.totalorder %s175, %s178
      %p187 = scmp.eq.s32.totalorder %s18, 1
      %p188 = por %p186, %p187
      %p189 = scmp.ne.s32.totalorder %s178, %s179
      %p190 = scmp.eq.s32.totalorder %s18, 0
      %p191 = por %p189, %p190
      %p192 = scmp.ne.s32.totalorder %s178, %s179
      %p193 = scmp.eq.s32.totalorder %s19, 1
      %p194 = por %p192, %p193
      %p196 = scmp.ne.s32.totalorder %s179, %s195
      %p197 = scmp.eq.s32.totalorder %s19, 0
      %p198 = por %p196, %p197
      %p199 = scmp.le.s32.totalorder 1, %s13
      %p200 = scmp.lt.s32.totalorder %s13, 3
      %p201 = pnand %p199, %p200
      %p202 = pneg %p201
      // Predicated region
      $region9: #{tpu_custom_call.1} parent=5 // pred_check
        _
      $region10: #{tpu_custom_call.1} parent=5 // pred_check_branch
        %204 = sbr.rel (%p201) target = $region12
      $region11: #{tpu_custom_call.1} parent=5 // pred_region
        %s205 = ssub.s32 %s13, 1
        // Predicated region
        $region13: #{tpu_custom_call.1} parent=11 // pred_check
          %p206 = pneg %p102
        $region14: #{tpu_custom_call.1} parent=11 // pred_check_branch
          %208 = sbr.rel (%p206) target = $region16
        $region15: #{tpu_custom_call.1} parent=11 // pred_region
          _
        $region16: #{tpu_custom_call.1} parent=11 // pred_fallthru
          _
        // Predicated region
        $region17: #{tpu_custom_call.1} parent=11 // pred_check
          %p209 = pneg %p123
        $region18: #{tpu_custom_call.1} parent=11 // pred_check_branch
          %211 = sbr.rel (%p209) target = $region20
        $region19: #{tpu_custom_call.1} parent=11 // pred_region
          _
        $region20: #{tpu_custom_call.1} parent=11 // pred_fallthru
          _
        // Predicated region
        $region21: #{tpu_custom_call.1} parent=11 // pred_check
          %p212 = pneg %p144
        $region22: #{tpu_custom_call.1} parent=11 // pred_check_branch
          %214 = sbr.rel (%p212) target = $region24
        $region23: #{tpu_custom_call.1} parent=11 // pred_region
          _
        $region24: #{tpu_custom_call.1} parent=11 // pred_fallthru
          _
        // Predicated region
        $region25: #{tpu_custom_call.1} parent=11 // pred_check
          %p215 = pneg %p165
        $region26: #{tpu_custom_call.1} parent=11 // pred_check_branch
          %217 = sbr.rel (%p215) target = $region28
        $region27: #{tpu_custom_call.1} parent=11 // pred_region
          _
        $region28: #{tpu_custom_call.1} parent=11 // pred_fallthru
          _
      $region12: #{tpu_custom_call.1} parent=5 // pred_fallthru
        _
      %p218 = scmp.lt.s32.totalorder %s13, 2
      // Predicated region
      $region29: #{tpu_custom_call.1} parent=5 // pred_check
        %p219 = pneg %p218
      $region30: #{tpu_custom_call.1} parent=5 // pred_check_branch
        %221 = sbr.rel (%p219) target = $region32
      $region31: #{tpu_custom_call.1} parent=5 // pred_region
        // Predicated region
        $region33: #{tpu_custom_call.1} parent=31 // pred_check
          %p222 = pneg %p47
        $region34: #{tpu_custom_call.1} parent=31 // pred_check_branch
          %224 = sbr.rel (%p222) target = $region36
        $region35: #{tpu_custom_call.1} parent=31 // pred_region
          %s225 = sand.u32 %s37, 1
          %s226 = sand.u32 %s37, 1
          %s227 = smul.addr %s226, 8
          %s228 = scalar_lea.vmem [#allocation4], %s227
          %s229 = smul.u32 2, %s20
          %s230 = smul.addr %s229, 2
          %s231 = sadd.s32 %s21, %s230
          %s232 = smul.addr %s231, 4
          %s233 = scalar_lea.vmem %s0, %s232
          // Predicated region
          $region37: #{tpu_custom_call.1} parent=35 // pred_check
            _
          $region38: #{tpu_custom_call.1} parent=35 // pred_check_branch
            %235 = sbr.rel (0) target = $region40
          $region39: #{tpu_custom_call.1} parent=35 // pred_region
            // Predicated region
            $region41: #{tpu_custom_call.1} parent=39 // pred_check
              _
            $region42: #{tpu_custom_call.1} parent=39 // pred_check_branch
              %237 = sbr.rel target = $region44
            $region43: #{tpu_custom_call.1} parent=39 // pred_region
              // Predicated region
              $region56: #{tpu_custom_call.1} parent=43 // pred_check
                _
              $region57: #{tpu_custom_call.1} parent=43 // pred_check_branch
                %254 = sbr.rel (0) target = $region59
              $region58: #{tpu_custom_call.1} parent=43 // pred_region
                loop: start=0, step=1, limit=1
                $region60: #{tpu_custom_call.1} parent=58 // loop_pre_header
                  _
                $region61: #{tpu_custom_call.1} parent=58 // loop_header
                  %s256 = sphi 0, %s260
                  %p257 = scmp.ge.s32.totalorder %s256, 1
                  %s261 = sphi %s233, %s233
                  %s262 = sphi %s228, %s228
                $region62: #{tpu_custom_call.1} parent=58 // loop_header_branch
                  %259 = sbr.rel (%p257) target = $region66
                $region63: #{tpu_custom_call.1} parent=58 // loop_body
                  _
                $region64: #{tpu_custom_call.1} parent=58 // loop_footer
                  %s260 = sadd.s32 1, %s256
                $region65: #{tpu_custom_call.1} parent=58 // loop_footer_branch
                  %255 = sbr.rel target = $region61
                $region66: #{tpu_custom_call.1} parent=58 // loop_exit
                  _
                loop: start=0, step=1, limit=1
                $region67: #{tpu_custom_call.1} parent=58 // loop_pre_header
                  _
                $region68: #{tpu_custom_call.1} parent=58 // loop_header
                  %s265 = sphi 0, %s269
                  %p266 = scmp.ge.s32.totalorder %s265, 1
                  %s270 = sphi %s233, %s233
                  %s271 = sphi %s228, %s228
                $region69: #{tpu_custom_call.1} parent=58 // loop_header_branch
                  %268 = sbr.rel (%p266) target = $region73
                $region70: #{tpu_custom_call.1} parent=58 // loop_body
                  %v272 = vld [vmem:[%s270] sm:$0xf]
                  %273 = vst [vmem:[%s271] sm:$0xf] %v272
                  %v274 = vld [vmem:[%s270 + $0x8] sm:$0xf]
                  %275 = vst [vmem:[%s271 + $0x4] sm:$0xf] %v274
                $region71: #{tpu_custom_call.1} parent=58 // loop_footer
                  %s269 = sadd.s32 1, %s265
                $region72: #{tpu_custom_call.1} parent=58 // loop_footer_branch
                  %264 = sbr.rel target = $region68
                $region73: #{tpu_custom_call.1} parent=58 // loop_exit
                  _
              $region59: #{tpu_custom_call.1} parent=43 // pred_fallthru
                _
            $region44: #{tpu_custom_call.1} parent=39 // pred_fallthru
              _
            // Predicated region
            $region45: #{tpu_custom_call.1} parent=39 // pred_check
              _
            $region46: #{tpu_custom_call.1} parent=39 // pred_check_branch
              %239 = sbr.rel (0) target = $region48
            $region47: #{tpu_custom_call.1} parent=39 // pred_region
              loop: start=0, step=1, limit=1
              $region49: #{tpu_custom_call.1} parent=47 // loop_pre_header
                _
              $region50: #{tpu_custom_call.1} parent=47 // loop_header
                %s242 = sphi 0, %s246
                %p243 = scmp.ge.s32.totalorder %s242, 1
                %s247 = sphi %s233, %s233
                %s248 = sphi %s228, %s228
              $region51: #{tpu_custom_call.1} parent=47 // loop_header_branch
                %245 = sbr.rel (%p243) target = $region55
              $region52: #{tpu_custom_call.1} parent=47 // loop_body
                %v249 = vld [vmem:[%s247] sm:$0xf]
                %250 = vst [vmem:[%s248] sm:$0xf] %v249
                %v251 = vld [vmem:[%s247 + $0x8] sm:$0xf]
                %252 = vst [vmem:[%s248 + $0x4] sm:$0xf] %v251
              $region53: #{tpu_custom_call.1} parent=47 // loop_footer
                %s246 = sadd.s32 1, %s242
              $region54: #{tpu_custom_call.1} parent=47 // loop_footer_branch
                %241 = sbr.rel target = $region50
              $region55: #{tpu_custom_call.1} parent=47 // loop_exit
                _
            $region48: #{tpu_custom_call.1} parent=39 // pred_fallthru
              _
          $region40: #{tpu_custom_call.1} parent=35 // pred_fallthru
            _
          %276 = vnop
        $region36: #{tpu_custom_call.1} parent=31 // pred_fallthru
          _
        // Predicated region
        $region74: #{tpu_custom_call.1} parent=31 // pred_check
          %p277 = pneg %p75
        $region75: #{tpu_custom_call.1} parent=31 // pred_check_branch
          %279 = sbr.rel (%p277) target = $region77
        $region76: #{tpu_custom_call.1} parent=31 // pred_region
          %p280 = scmp.lt.s32.totalorder %s20, 0
          %s281 = scalar_select %p280, %s20, 0
          %p282 = scmp.lt.s32.totalorder %s21, 1
          %s283 = scalar_select %p282, %s21, 1
          %s284 = smul.addr %s281, 2
          %s285 = sadd.s32 %s283, %s284
          %s286 = smul.addr %s285, 2
          %s287 = scalar_lea.vmem %s1, %s286
        $region77: #{tpu_custom_call.1} parent=31 // pred_fallthru
          _
      $region32: #{tpu_custom_call.1} parent=5 // pred_fallthru
        _
      %p288 = scmp.le.s32.totalorder 1, %s13
      %p289 = scmp.lt.s32.totalorder %s13, 3
      %p290 = pnand %p288, %p289
      %p291 = pneg %p290
      // Predicated region
      $region78: #{tpu_custom_call.1} parent=5 // pred_check
        _
      $region79: #{tpu_custom_call.1} parent=5 // pred_check_branch
        %293 = sbr.rel (%p290) target = $region81
      $region80: #{tpu_custom_call.1} parent=5 // pred_region
        %s294 = ssub.s32 %s13, 1
        %s295 = sand.u32 %s40, 1
        %s296 = sand.u32 %s40, 1
        %s297 = smul.addr %s296, 8
        %s298 = scalar_lea.vmem [#allocation4], %s297
        // Predicated region
        $region82: #{tpu_custom_call.1} parent=80 // pred_check
          %p299 = pneg %p53
        $region83: #{tpu_custom_call.1} parent=80 // pred_check_branch
          %301 = sbr.rel (%p299) target = $region85
        $region84: #{tpu_custom_call.1} parent=80 // pred_region
          _
        $region85: #{tpu_custom_call.1} parent=80 // pred_fallthru
          _
        %s302 = sand.u32 %s40, 1
        %s303 = sand.u32 %s40, 1
        %s304 = smul.addr %s303, 8
        %s305 = scalar_lea.vmem [#allocation4], %s304
        %p306 = pneg %p53
        %p307 = pneg %p50
        %p308 = scmp.lt.s32.totalorder %s22, 0
        %s309 = scalar_select %p308, %s22, 0
        %p310 = scmp.lt.s32.totalorder %s23, 1
        %s311 = scalar_select %p310, %s23, 1
        %s312 = smul.addr %s309, 2
        %s313 = sadd.s32 %s311, %s312
        %s314 = smul.addr %s313, 2
        %s315 = scalar_lea.vmem %s1, %s314
        %p316 = pneg %p81
        %p317 = pneg %p78
        %p318 = pneg %p102
        %p319 = pneg %p99
        %p320 = pneg %p123
        %p321 = pneg %p120
        %p322 = pneg %p144
        %p323 = pneg %p141
        %p324 = pneg %p165
        %p325 = pneg %p162
        %p326 = pneg %p191
        %p327 = pneg %p188
        %s328 = smul.u32 2, %s22
        %p329 = scmp.lt.s32.totalorder %s22, 0
        %s330 = scalar_select %p329, %s22, 0
        %p331 = scmp.lt.s32.totalorder %s23, 1
        %s332 = scalar_select %p331, %s23, 1
        %s333 = smul.addr %s330, 2
        %s334 = sadd.s32 %s332, %s333
        %s335 = smul.addr %s334, 2
        %s336 = scalar_lea.vmem %s1, %s335
        %p337 = scmp.eq.s32.totalorder %s23, 0
        // Predicated region
        $region86: #{tpu_custom_call.1} parent=80 // pred_check
          %p338 = pneg %p337
        $region87: #{tpu_custom_call.1} parent=80 // pred_check_branch
          %340 = sbr.rel (%p338) target = $region89
        $region88: #{tpu_custom_call.1} parent=80 // pred_region
          %vm341 = vcmask 17408
          %342 = vst.msk [vmem:[#allocation2] sm:$0x3] %vm341, 0.0
          %vm343 = vcmask 1024
          %344 = vst.msk [vmem:[#allocation3] sm:$0x3] %vm343, 0.0
        $region89: #{tpu_custom_call.1} parent=80 // pred_fallthru
          _
        %v345 = vld [vmem:[%s298] sm:$0x7]
        %v346 = vld [vmem:[%s298 + $0x4] sm:$0x7]
        %v347 = vld [vmem:[%s336] sm:$0x3]
        %v348 = vld [vmem:[#allocation2] sm:$0x3]
        %v351 = vunpack.c.l.s4 1966171168
        %v352 = vunpack.c.0.s8 %v351
        %v353 = vlaneseq
        %v354 = vshrl.u32 %v353, 7
        %v355 = vsub.s32 %v352, %v354
        %v356 = vrot.slane %v347, %v355
        %v357 = vcombine.high %v356, %v356
        %v359 = vunpack.c.l.s4 1966171168
        %v360 = vunpack.c.0.s8 %v359
        %v361 = vlaneseq
        %v362 = vshrl.u32 %v361, 7
        %v363 = vsub.s32 %v360, %v362
        %v364 = vrot.slane %v356, %v363
        %v366 = vunpack.c.l.s4 1966171168
        %v367 = vunpack.c.0.s8 %v366
        %v368 = vlaneseq
        %v369 = vshrl.u32 %v368, 7
        %v370 = vsub.s32 %v367, %v369
        %v371 = vrot.slane %v357, %v370
        %v372 = vlaneseq
        %v373 = vshrl.u32 %v372, 7
        %v374 = vsub.s32 0, %v373
        %v375 = vrot.slane %v364, %v374
        %v376 = vlaneseq
        %v377 = vshrl.u32 %v376, 7
        %v378 = vsub.s32 0, %v377
        %v379 = vrot.slane %v371, %v378
        %v382 = vmul.f32 %v345, %v375
        %v383 = vmul.f32 %v346, %v379
        %vm384 = vcmask 1042432
        %v385 = vsel %vm384, %v382, 0.0
        %386 = vadd.xlane.f32.xlu0 %v385
        %v387 = vpop.xlane.xlu0 %386
        %v388 = vsel %vm384, %v383, 0.0
        %389 = vadd.xlane.f32.xlu0 %v388
        %v390 = vpop.xlane.xlu0 %389
        %v393 = vlaneseq
        %v394 = vand.u32 %v393, 127
        %v395 = vlaneseq
        %v396 = vshrl.u32 %v395, 7
        %v397 = vsub.s32 %v394, %v396
        %v398 = vrot.slane %v387, %v397
        %v399 = vlaneseq
        %v400 = vshrl.u32 %v399, 7
        %v401 = vsub.s32 %v394, %v400
        %v402 = vrot.slane %v390, %v401
        %vm403 = vcmask 1041409
        %v404 = vsel %vm403, %v402, %v398
        %v406 = vadd.f32 %v348, %v404
        %vm407 = vcmask 17408
        %408 = vst.msk [vmem:[#allocation2] sm:$0x3] %vm407, %v406
        %v409 = vld [vmem:[#allocation3] sm:$0x3]
        %vm410 = vcmask 1041408
        %v411 = vsel %vm410, %v347, 0.0
        %412 = vadd.xlane.f32.xlu0 %v411
        %v413 = vpop.xlane.xlu0 %412
        %v414 = vadd.f32 %v409, %v413
        %vm415 = vcmask 1024
        %416 = vst.msk [vmem:[#allocation3] sm:$0x3] %vm415, %v414
        %p417 = scmp.eq.s32.totalorder %s23, 1
        // Predicated region
        $region90: #{tpu_custom_call.1} parent=80 // pred_check
          %p418 = pneg %p417
        $region91: #{tpu_custom_call.1} parent=80 // pred_check_branch
          %420 = sbr.rel (%p418) target = $region93
        $region92: #{tpu_custom_call.1} parent=80 // pred_region
          %v421 = vld [vmem:[#allocation2] sm:$0x3]
          %v422 = vld [vmem:[%s2] sm:$0x1]
          %v424 = vlaneseq
          %v425 = vshrl.u32 %v424, 7
          %v426 = vsub.s32 0, %v425
          %v427 = vrot.slane %v422, %v426
          %v429 = vmul.f32 %v421, %v427
          %v430 = vld [vmem:[#allocation3] sm:$0x3]
          %v431 = vld [vmem:[%s3] sm:$0x1]
          %433 = vset.pattern.permute.xlu0 0
          %434 = vperm.xlu0 %433, %v430
          %v435 = vpop.permute.xlu0 %434
          %v438 = vlaneseq
          %v439 = vshrl.u32 %v438, 7
          %v440 = vsub.s32 0, %v439
          %v441 = vrot.slane %v431, %v440
          %v443 = vmul.f32 %v435, %v441
          %v444 = vsub.f32 %v429, %v443
          %v445 = vld [vmem:[%s4] sm:$0x7]
          %vm446 = vcmask 23552
          %v448 = vsel %vm446, %v444, 0
          %v451 = vsel %vm384, %v445, 0
          %453 = vmatprep.subr.mxu0 0.0
          %454 = vmatpush1.msra.mxu0 %v451
          %455 = vmatprep.subr.mxu0 0.0
          %456 = vmatpush1.msra.mxu0 0.0
          %457 = vmatprep.subr.mxu0 0.0
          %458 = vmatpush1.msra.mxu0 0.0
          %459 = vmatprep.subr.mxu0 0.0
          %460 = vmatpush1.msra.mxu0 0.0
          %461 = vmatprep.subr.mxu0 0.0
          %462 = vmatpush1.msra.mxu0 0.0
          %463 = vmatprep.subr.mxu0 0.0
          %464 = vmatpush1.msra.mxu0 0.0
          %465 = vmatprep.subr.mxu0 0.0
          %466 = vmatpush1.msra.mxu0 0.0
          %467 = vmatprep.subr.mxu0 0.0
          %468 = vmatpush1.msra.mxu0 0.0
          %469 = vmatprep.subr.mxu0 0.0
          %470 = vmatpush1.msra.mxu0 0.0
          %471 = vmatprep.subr.mxu0 0.0
          %472 = vmatpush1.msra.mxu0 0.0
          %473 = vmatprep.subr.mxu0 0.0
          %474 = vmatpush1.msra.mxu0 0.0
          %475 = vmatprep.subr.mxu0 0.0
          %476 = vmatpush1.msra.mxu0 0.0
          %477 = vmatprep.subr.mxu0 0.0
          %478 = vmatpush1.msra.mxu0 0.0
          %479 = vmatprep.subr.mxu0 0.0
          %480 = vmatpush1.msra.mxu0 0.0
          %481 = vmatprep.subr.mxu0 0.0
          %482 = vmatpush1.msra.mxu0 0.0
          %483 = vmatprep.subr.mxu0 0.0
          %484 = vmatpush1.msra.mxu0 0.0
          %485 = vmatprep.subr.mxu0 0.0
          %486 = vmatpush1.msra.mxu0 0.0
          %487 = vmatprep.subr.mxu0 0.0
          %488 = vmatpush1.msra.mxu0 0.0
          %489 = vmatprep.subr.mxu0 0.0
          %490 = vmatpush1.msra.mxu0 0.0
          %491 = vmatprep.subr.mxu0 0.0
          %492 = vmatpush1.msra.mxu0 0.0
          %493 = vmatprep.subr.mxu0 0.0
          %494 = vmatpush1.msra.mxu0 0.0
          %495 = vmatprep.subr.mxu0 0.0
          %496 = vmatpush1.msra.mxu0 0.0
          %497 = vmatprep.subr.mxu0 0.0
          %498 = vmatpush1.msra.mxu0 0.0
          %499 = vmatprep.subr.mxu0 0.0
          %500 = vmatpush1.msra.mxu0 0.0
          %501 = vmatprep.subr.mxu0 0.0
          %502 = vmatpush1.msra.mxu0 0.0
          %503 = vmatprep.subr.mxu0 0.0
          %504 = vmatpush1.msra.mxu0 0.0
          %505 = vmatprep.subr.mxu0 0.0
          %506 = vmatpush1.msra.mxu0 0.0
          %507 = vmatprep.subr.mxu0 0.0
          %508 = vmatpush1.msra.mxu0 0.0
          %509 = vmatprep.subr.mxu0 0.0
          %510 = vmatpush1.msra.mxu0 0.0
          %511 = vmatprep.subr.mxu0 0.0
          %512 = vmatpush1.msra.mxu0 0.0
          %513 = vmatprep.subr.mxu0 0.0
          %514 = vmatpush1.msra.mxu0 0.0
          %515 = vmatprep.subr.mxu0 0.0
          %516 = vmatpush1.msra.mxu0 0.0
          %517 = vmatprep.mubr.f32.mxu0 0.0
          %518 = vmatmul.mubr.f32.gmra.mrb[0].mxu0 %v448
          %v519 = vpop.f32.mrb[0].mxu0
          %v520 = vadd.f32 0.0, %v519
          %v521 = vpop.f32.mrb[0].mxu0
          %522 = vdwg.mxu0
          %v523 = vmul.f32 %v520, %v520
          %vm524 = vcmask 254976
          %v525 = vsel %vm524, %v523, 0.0
          %526 = vadd.xlane.f32.xlu0 %v525
          %v527 = vpop.xlane.xlu0 %526
          %v528 = vadd.f32 %v527, 1e-06
          %v529 = vrsqrt.pop %v528
          %v530 = vmul.f32 %v520, %v529
          %v531 = vld [vmem:[%s5] sm:$0xff]
          %v532 = vld [vmem:[%s5 + $0x8] sm:$0xff]
          %v533 = vld [vmem:[%s5 + $0x10] sm:$0xff]
          %v534 = vld [vmem:[%s5 + $0x18] sm:$0xff]
          %vm535 = vcmask 261120
          %v537 = vsel %vm535, %v530, 0
          %539 = vmatprep.subr.mxu0 0.0
          %540 = vmatpush1.msra.mxu0 %v531
          %541 = vmatprep.subr.mxu0 0.0
          %542 = vmatpush1.msra.mxu0 %v532
          %543 = vmatprep.subr.mxu0 0.0
          %544 = vmatpush1.msra.mxu0 %v533
          %545 = vmatprep.subr.mxu0 0.0
          %546 = vmatpush1.msra.mxu0 %v534
          %547 = vmatprep.subr.mxu0 0.0
          %548 = vmatpush1.msra.mxu0 0.0
          %549 = vmatprep.subr.mxu0 0.0
          %550 = vmatpush1.msra.mxu0 0.0
          %551 = vmatprep.subr.mxu0 0.0
          %552 = vmatpush1.msra.mxu0 0.0
          %553 = vmatprep.subr.mxu0 0.0
          %554 = vmatpush1.msra.mxu0 0.0
          %555 = vmatprep.subr.mxu0 0.0
          %556 = vmatpush1.msra.mxu0 0.0
          %557 = vmatprep.subr.mxu0 0.0
          %558 = vmatpush1.msra.mxu0 0.0
          %559 = vmatprep.subr.mxu0 0.0
          %560 = vmatpush1.msra.mxu0 0.0
          %561 = vmatprep.subr.mxu0 0.0
          %562 = vmatpush1.msra.mxu0 0.0
          %563 = vmatprep.subr.mxu0 0.0
          %564 = vmatpush1.msra.mxu0 0.0
          %565 = vmatprep.subr.mxu0 0.0
          %566 = vmatpush1.msra.mxu0 0.0
          %567 = vmatprep.subr.mxu0 0.0
          %568 = vmatpush1.msra.mxu0 0.0
          %569 = vmatprep.subr.mxu0 0.0
          %570 = vmatpush1.msra.mxu0 0.0
          %571 = vmatprep.subr.mxu0 0.0
          %572 = vmatpush1.msra.mxu0 0.0
          %573 = vmatprep.subr.mxu0 0.0
          %574 = vmatpush1.msra.mxu0 0.0
          %575 = vmatprep.subr.mxu0 0.0
          %576 = vmatpush1.msra.mxu0 0.0
          %577 = vmatprep.subr.mxu0 0.0
          %578 = vmatpush1.msra.mxu0 0.0
          %579 = vmatprep.subr.mxu0 0.0
          %580 = vmatpush1.msra.mxu0 0.0
          %581 = vmatprep.subr.mxu0 0.0
          %582 = vmatpush1.msra.mxu0 0.0
          %583 = vmatprep.subr.mxu0 0.0
          %584 = vmatpush1.msra.mxu0 0.0
          %585 = vmatprep.subr.mxu0 0.0
          %586 = vmatpush1.msra.mxu0 0.0
          %587 = vmatprep.subr.mxu0 0.0
          %588 = vmatpush1.msra.mxu0 0.0
          %589 = vmatprep.subr.mxu0 0.0
          %590 = vmatpush1.msra.mxu0 0.0
          %591 = vmatprep.subr.mxu0 0.0
          %592 = vmatpush1.msra.mxu0 0.0
          %593 = vmatprep.subr.mxu0 0.0
          %594 = vmatpush1.msra.mxu0 0.0
          %595 = vmatprep.subr.mxu0 0.0
          %596 = vmatpush1.msra.mxu0 0.0
          %597 = vmatprep.subr.mxu0 0.0
          %598 = vmatpush1.msra.mxu0 0.0
          %599 = vmatprep.subr.mxu0 0.0
          %600 = vmatpush1.msra.mxu0 0.0
          %601 = vmatprep.subr.mxu0 0.0
          %602 = vmatpush1.msra.mxu0 0.0
          %603 = vmatprep.mubr.f32.mxu0 0.0
          %604 = vmatmul.mubr.f32.gmra.mrb[0].mxu0 %v537
          %v605 = vpop.f32.mrb[0].mxu0
          %v606 = vadd.f32 0.0, %v605
          %v607 = vpop.f32.mrb[0].mxu0
          %608 = vdwg.mxu0
          %vm609 = vcmask 58368
          %610 = vst.msk [vmem:[#allocation5] sm:$0x3] %vm609, %v606
        $region93: #{tpu_custom_call.1} parent=80 // pred_fallthru
          _
        // Predicated region
        $region94: #{tpu_custom_call.1} parent=80 // pred_check
          %p611 = pneg %p188
        $region95: #{tpu_custom_call.1} parent=80 // pred_check_branch
          %613 = sbr.rel (%p611) target = $region97
        $region96: #{tpu_custom_call.1} parent=80 // pred_region
          %s615 = ssub.s32 32, 32
          %616 = vsyncadd [#allocation6], %s615
          %s617 = smul.addr %s22, 32
          %s618 = scalar_lea.hbm %s6, %s617
          %s620 = sshll.u32 [#allocation5], 4
          %s621 = int_to_ptr.vmem [resolvable:$true] %s620
          %623 = dma.vmem_to_hbm [thread:$0]  %s621, 32, %s618, [#allocation6]
        $region97: #{tpu_custom_call.1} parent=80 // pred_fallthru
          _
        // Predicated region
        $region98: #{tpu_custom_call.1} parent=80 // pred_check
          %p624 = pneg %p188
        $region99: #{tpu_custom_call.1} parent=80 // pred_check_branch
          %626 = sbr.rel (%p624) target = $region101
        $region100: #{tpu_custom_call.1} parent=80 // pred_region
          %627 = dma.done [#allocation6], 32
        $region101: #{tpu_custom_call.1} parent=80 // pred_fallthru
          _
      $region81: #{tpu_custom_call.1} parent=5 // pred_fallthru
        _
      %p628 = scmp.le.s32.totalorder 2, %s13
      // Predicated region
      $region102: #{tpu_custom_call.1} parent=5 // pred_check
        %p629 = pneg %p628
      $region103: #{tpu_custom_call.1} parent=5 // pred_check_branch
        %631 = sbr.rel (%p629) target = $region105
      $region104: #{tpu_custom_call.1} parent=5 // pred_region
        %s632 = ssub.s32 %s13, 2
      $region105: #{tpu_custom_call.1} parent=5 // pred_fallthru
        _
    $region6: #{tpu_custom_call.1} parent=1 // loop_footer
      %s17 = sadd.s32 1, %s13
    $region7: #{tpu_custom_call.1} parent=1 // loop_footer_branch
      %12 = sbr.rel target = $region3
    $region8: #{tpu_custom_call.1} parent=1 // loop_exit
      _
    %633 = vsyncpa [#allocation6], 1
    %s634 = scalar_lea.sflag [#allocation6], 1
    %635 = vsyncpa %s634, 1

</llo_original>
